<compile_context>
chip_gen: v7x
topology: tpu7x:2x2x1
jax: 0.10.0
libtpu: 0.0.40
codegen_flags: <defaults>
</compile_context>

<pallas_src>
import functools

import jax
import jax.numpy as jnp
from jax.experimental import pallas as pl
from jax.experimental.pallas import tpu as pltpu


def _full_spec(shape):
    """Whole-array block (grid=(1,)); block dims equal full array dims."""
    zeros = (0,) * len(shape)
    return pl.BlockSpec(shape, lambda i: zeros)


_ARB = pltpu.CompilerParams(dimension_semantics=("arbitrary",))


# ---------------- Kernel A: fused user-mean + pool scoring (no-grad path) ----------------
def _pool_score_kernel(h_ref, pool_t_ref, pool_idx_ref, pos_ref, m_ref, s_ref,
                       *, p_real):
    e = jnp.mean(h_ref[...], axis=1)                                        # (B, D)
    q = jnp.dot(e, m_ref[...], preferred_element_type=jnp.float32)         # (B, D)
    # Single 2-D MXU matmul against the (D, P_pad) pool (pool is shared, not
    # broadcast per batch row).  P_pad is a multiple of 128 -> lane-dense store.
    s = jnp.dot(q, pool_t_ref[...], preferred_element_type=jnp.float32)    # (B, P_pad)
    # Mask padded columns and positive-item collisions so top-k never picks them.
    col = jax.lax.broadcasted_iota(jnp.int32, s.shape, 1)
    pad_mask = col >= p_real
    pos_mask = pool_idx_ref[...] == pos_ref[...]                            # (1,P)==(B,1)
    s_ref[...] = jnp.where(pad_mask | pos_mask, -1e30, s)


def pool_score(hist_embs, pool_embs_t, pool_idx_pad, pos_idx, m_bilinear, p_real):
    B, L, D = hist_embs.shape
    _, P_pad = pool_embs_t.shape
    kern = functools.partial(_pool_score_kernel, p_real=int(p_real))
    return pl.pallas_call(
        kern,
        out_shape=jax.ShapeDtypeStruct((B, P_pad), jnp.float32),
        grid=(1,),
        in_specs=[_full_spec((B, L, D)), _full_spec((D, P_pad)),
                  _full_spec((1, P_pad)), _full_spec((B, 1)),
                  _full_spec((D, D))],
        out_specs=_full_spec((B, P_pad)),
        compiler_params=_ARB,
    )(hist_embs, pool_embs_t,
      pool_idx_pad.reshape(1, P_pad).astype(jnp.int32),
      pos_idx.reshape(B, 1).astype(jnp.int32),
      m_bilinear)


# ------------- Kernel B: fused user-mean + candidate scoring + InfoNCE + reg -------------
def _cand_loss_kernel(h_ref, cand_ref, m_ref, o_ref, *, temp, eta, B):
    e = jnp.mean(h_ref[...], axis=1)                                        # (B, D)
    q = jnp.dot(e, m_ref[...], preferred_element_type=jnp.float32)         # (B, D)
    s = jnp.sum(q[:, None, :] * cand_ref[...], axis=-1)                     # (B, N)
    logits = s * (1.0 / temp)                                               # s / temp
    m = jnp.max(logits, axis=1, keepdims=True)                              # stable LSE
    lse = jnp.log(jnp.sum(jnp.exp(logits - m), axis=1, keepdims=True)) + m
    per_b = lse - logits[:, 0:1]                                            # CE, label 0
    w = jax.nn.sigmoid(logits)                                              # sigmoid(s/temp)
    nce = jnp.sum(per_b, axis=0, keepdims=True) * (1.0 / B)                 # (1, 1)
    reg = jnp.sum(jnp.sum(w, axis=1, keepdims=True),
                  axis=0, keepdims=True) * (1.0 / B)                        # (1, 1)
    o_ref[...] = nce + eta * reg


def cand_loss(hist_embs, cand_emb, m_bilinear, temp, eta):
    B, L, D = hist_embs.shape
    _, N, _ = cand_emb.shape
    kern = functools.partial(_cand_loss_kernel, temp=float(temp), eta=float(eta), B=B)
    return pl.pallas_call(
        kern,
        out_shape=jax.ShapeDtypeStruct((1, 1), jnp.float32),
        grid=(1,),
        in_specs=[_full_spec((B, L, D)), _full_spec((B, N, D)), _full_spec((D, D))],
        out_specs=_full_spec((1, 1)),
        compiler_params=_ARB,
    )(hist_embs, cand_emb, m_bilinear)


# ---------------- full forward (glue: gathers, pool sampling, top-k, concat) ----------------
def sarrec_forward(params, hist_batch, pos_batch, pool_key,
                   K_neg=8, pool_factor=5, temp=0.05, eta=0.001):
    item_emb = params['item_emb']          # (num_items, D)
    wq, wk = params['wq'], params['wk']
    num_items, D = item_emb.shape
    B, _ = hist_batch.shape

    # Fold the two projections into one bilinear matrix: s = e_u @ (Wq Wk^T) @ cand^T.
    m_bilinear = wq @ wk.T                                              # (D, D)

    hist_embs = item_emb[hist_batch]                                    # (B, L, D)  gather = glue
    pos_embs = item_emb[pos_batch]                                      # (B, D)

    # Negative-pool sampling (mirrors np.random.choice(..., replace=False)).
    pool_size = K_neg * pool_factor
    pool_idxs = jax.random.choice(pool_key, num_items, (pool_size,),
                                  replace=False).astype(jnp.int32)
    # Pad pool to a lane-dense multiple of 128 (masked to -1e30 inside the kernel);
    # store it transposed (D, P_pad) so the kernel does a plain NN matmul.
    p_pad = max(128, ((pool_size + 127) // 128) * 128)
    pool_idx_pad = jnp.zeros((p_pad,), jnp.int32).at[:pool_size].set(pool_idxs)
    pool_embs_pad = jnp.zeros((p_pad, D), item_emb.dtype).at[:pool_size].set(
        item_emb[pool_idxs])
    pool_embs_t = pool_embs_pad.T                                       # (D, P_pad)

    # Kernel A: fused mean + pool scoring (torch.no_grad path).  Positive items
    # that land in the pool are masked out so they cannot be picked as "hard
    # negatives" (fix for the label-corruption concern in the original).
    s_pool = pool_score(jax.lax.stop_gradient(hist_embs),
                        jax.lax.stop_gradient(pool_embs_t),
                        pool_idx_pad, pos_batch,
                        jax.lax.stop_gradient(m_bilinear),
                        pool_size)                                      # (B, P_pad)

    _, topk = jax.lax.top_k(s_pool, K_neg)                              # (B, K_neg)
    neg_idxs = pool_idx_pad[topk]                                       # (B, K_neg)
    neg_embs = item_emb[neg_idxs]                                       # (B, K_neg, D)

    cand_emb = jnp.concatenate([pos_embs[:, None, :], neg_embs], axis=1)  # (B, 1+K, D)

    # Kernel B: fused mean + candidate scoring + InfoNCE + weight-reg; only the
    # scalar loss goes back to HBM.
    loss = cand_loss(hist_embs, cand_emb, m_bilinear, temp, eta)        # (1, 1)
    # TODO(synk): tokenizer + LLM generator loss (loss_gen) and the string prompt
    # construction have no Pallas equivalent; omitted (loss = loss_nce + loss_reg).
    return loss[0, 0]


if __name__ == "__main__":
    key = jax.random.PRNGKey(0)
    k1, k2, k3, k4, k5, k6 = jax.random.split(key, 6)

    num_items, D = 64, 32
    B, L = 2, 8
    K_neg, pool_factor, temp, eta = 8, 5, 0.05, 0.001

    params = {
        'item_emb': (jax.random.normal(k1, (num_items, D), jnp.float32) * 0.1),
        'wq': jax.random.normal(k2, (D, D), jnp.float32) / jnp.sqrt(D),
        'wk': jax.random.normal(k3, (D, D), jnp.float32) / jnp.sqrt(D),
    }
    hist_batch = jax.random.randint(k4, (B, L), 0, num_items)   # fixed-length histories
    pos_batch = jax.random.randint(k5, (B,), 0, num_items)

    loss = sarrec_forward(params, hist_batch, pos_batch, k6,
                          K_neg=K_neg, pool_factor=pool_factor, temp=temp, eta=eta)
    jax.block_until_ready(loss)
    assert loss.shape == () and jnp.isfinite(loss)
    print("KERNEL_OK")
</pallas_src>

<mosaic_0001>
module attributes {stable_mosaic.version = 11 : i64} {
  func.func @_pool_score_kernel(%arg0: i32, %arg1: memref<2x8x32xf32, #tpu.memory_space<vmem>>, %arg2: memref<32x128xf32, #tpu.memory_space<vmem>>, %arg3: memref<1x128xi32, #tpu.memory_space<vmem>>, %arg4: memref<2x1xi32, #tpu.memory_space<vmem>>, %arg5: memref<32x32xf32, #tpu.memory_space<vmem>>, %arg6: memref<2x128xf32, #tpu.memory_space<vmem>>) attributes {dimension_semantics = [#tpu.dimension_semantics<arbitrary>], iteration_bounds = array<i64: 1>, scalar_prefetch = 0 : i64, scratch_operands = 0 : i64, tpu.core_type = #tpu.core_type<tc>, window_params = [{pipeline_mode = #tpu.pipeline_mode<synchronous>, transform_indices = @transform_0, window_bounds = array<i64: 2, 8, 32>}, {pipeline_mode = #tpu.pipeline_mode<synchronous>, transform_indices = @transform_1, window_bounds = array<i64: 32, 128>}, {pipeline_mode = #tpu.pipeline_mode<synchronous>, transform_indices = @transform_2, window_bounds = array<i64: 1, 128>}, {pipeline_mode = #tpu.pipeline_mode<synchronous>, transform_indices = @transform_3, window_bounds = array<i64: 2, 1>}, {pipeline_mode = #tpu.pipeline_mode<synchronous>, transform_indices = @transform_4, window_bounds = array<i64: 32, 32>}, {pipeline_mode = #tpu.pipeline_mode<synchronous>, transform_indices = @transform_5, window_bounds = array<i64: 2, 128>}]} {
    %c0 = arith.constant 0 : index
    %c0_0 = arith.constant 0 : index
    %c0_1 = arith.constant 0 : index
    %0 = vector.load %arg1[%c0, %c0_0, %c0_1] : memref<2x8x32xf32, #tpu.memory_space<vmem>>, vector<2x8x32xf32>
    %cst = arith.constant dense<0.000000e+00> : vector<2x32xf32>
    %1 = vector.multi_reduction <add>, %0, %cst [1] : vector<2x8x32xf32> to vector<2x32xf32>
    %cst_2 = arith.constant 8.000000e+00 : f32
    %2 = vector.broadcast %cst_2 : f32 to vector<2x32xf32>
    %3 = arith.divf %1, %2 : vector<2x32xf32>
    %c0_3 = arith.constant 0 : index
    %c0_4 = arith.constant 0 : index
    %4 = vector.load %arg5[%c0_3, %c0_4] : memref<32x32xf32, #tpu.memory_space<vmem>>, vector<32x32xf32>
    %cst_5 = arith.constant dense<0.000000e+00> : vector<2x32xf32>
    %5 = tpu.matmul %3, %4, %cst_5 {dimension_numbers = #tpu.dot_dimension_numbers<[1], [0], [0], [1], [0, 0, 1, 1], [], []>} : vector<2x32xf32>, vector<32x32xf32>, vector<2x32xf32> -> vector<2x32xf32>
    %c0_6 = arith.constant 0 : index
    %c0_7 = arith.constant 0 : index
    %6 = vector.load %arg2[%c0_6, %c0_7] : memref<32x128xf32, #tpu.memory_space<vmem>>, vector<32x128xf32>
    %cst_8 = arith.constant dense<0.000000e+00> : vector<2x128xf32>
    %7 = tpu.matmul %5, %6, %cst_8 {dimension_numbers = #tpu.dot_dimension_numbers<[1], [0], [0], [1], [0, 0, 1, 1], [], []>} : vector<2x32xf32>, vector<32x128xf32>, vector<2x128xf32> -> vector<2x128xf32>
    %8 = tpu.iota {dimensions = array<i32: 1>} : vector<2x128xi32>
    %c40_i32 = arith.constant 40 : i32
    %9 = vector.broadcast %c40_i32 : i32 to vector<2x128xi32>
    %10 = arith.cmpi sge, %8, %9 : vector<2x128xi32>
    %c0_9 = arith.constant 0 : index
    %c0_10 = arith.constant 0 : index
    %11 = vector.load %arg3[%c0_9, %c0_10] : memref<1x128xi32, #tpu.memory_space<vmem>>, vector<1x128xi32>
    %c0_11 = arith.constant 0 : index
    %c0_12 = arith.constant 0 : index
    %12 = vector.load %arg4[%c0_11, %c0_12] : memref<2x1xi32, #tpu.memory_space<vmem>>, vector<2x1xi32>
    %13 = vector.broadcast %11 : vector<1x128xi32> to vector<2x128xi32>
    %14 = vector.broadcast %12 : vector<2x1xi32> to vector<2x128xi32>
    %15 = arith.cmpi eq, %13, %14 : vector<2x128xi32>
    %16 = arith.ori %10, %15 : vector<2x128xi1>
    %cst_13 = arith.constant -1.000000e+30 : f32
    %17 = vector.broadcast %cst_13 : f32 to vector<2x128xf32>
    %18 = arith.select %16, %17, %7 : vector<2x128xi1>, vector<2x128xf32>
    %c0_14 = arith.constant 0 : index
    %c0_15 = arith.constant 0 : index
    %19 = vector.load %arg6[%c0_14, %c0_15] : memref<2x128xf32, #tpu.memory_space<vmem>>, vector<2x128xf32>
    tpu.vector_store %arg6[%c0_14, %c0_15], %18 {strides = array<i32>} : memref<2x128xf32, #tpu.memory_space<vmem>>, vector<2x128xf32>,
    return
  }
  func.func @transform_0(%arg0: i32) -> (i32, i32, i32) {
    %c0_i32 = arith.constant 0 : i32
    %c0_i32_0 = arith.constant 0 : i32
    %c0_i32_1 = arith.constant 0 : i32
    %c0_i32_2 = arith.constant 0 : i32
    return %c0_i32, %c0_i32_0, %c0_i32_1 : i32, i32, i32
  }
  func.func @transform_1(%arg0: i32) -> (i32, i32) {
    %c0_i32 = arith.constant 0 : i32
    %c0_i32_0 = arith.constant 0 : i32
    %c0_i32_1 = arith.constant 0 : i32
    return %c0_i32, %c0_i32_0 : i32, i32
  }
  func.func @transform_2(%arg0: i32) -> (i32, i32) {
    %c0_i32 = arith.constant 0 : i32
    %c0_i32_0 = arith.constant 0 : i32
    %c0_i32_1 = arith.constant 0 : i32
    return %c0_i32, %c0_i32_0 : i32, i32
  }
  func.func @transform_3(%arg0: i32) -> (i32, i32) {
    %c0_i32 = arith.constant 0 : i32
    %c0_i32_0 = arith.constant 0 : i32
    %c0_i32_1 = arith.constant 0 : i32
    return %c0_i32, %c0_i32_0 : i32, i32
  }
  func.func @transform_4(%arg0: i32) -> (i32, i32) {
    %c0_i32 = arith.constant 0 : i32
    %c0_i32_0 = arith.constant 0 : i32
    %c0_i32_1 = arith.constant 0 : i32
    return %c0_i32, %c0_i32_0 : i32, i32
  }
  func.func @transform_5(%arg0: i32) -> (i32, i32) {
    %c0_i32 = arith.constant 0 : i32
    %c0_i32_0 = arith.constant 0 : i32
    %c0_i32_1 = arith.constant 0 : i32
    return %c0_i32, %c0_i32_0 : i32, i32
  }
}

</mosaic_0001>

<llo_original>
// kernel: tpu_custom_call.1
$region0: #{tpu_custom_call.1}
  #allocation0 [shape = 'u32[]', space=smem, size = 0x4, offset = 0x4, fixed_abs, tag = 'smem constant byte address 0x4 - core index']
  #allocation1 [shape = 'u32[144,128]{1,0:T(1,128)}', space=vmem, size = 0x12000, scoped, tag = 'internal scratch']
  %s0 = inlined_call_operand.hbm [shape: f32[2,8,32], index: 0, kind: input, shape index: {}]
  %s1 = inlined_call_operand.hbm [shape: f32[32,128], index: 1, kind: input, shape index: {}]
  %s2 = inlined_call_operand.vmem [shape: s32[1,128], index: 2, kind: input, shape index: {}]
  %s3 = inlined_call_operand.vmem [shape: s32[2,1], index: 3, kind: input, shape index: {}]
  %s4 = inlined_call_operand.hbm [shape: f32[32,32], index: 4, kind: input, shape index: {}]
  %s5 = inlined_call_operand.hbm [shape: f32[2,128], index: 5, kind: output, shape index: {}]
  %s6 = sld [smem:[#allocation0]]
  $region42: #{tpu_custom_call.1} parent=0
    _
  %s8 = ssub.s32 1, %s6
  %s9 = scalar_select 0, %s8, %s6
  $region1: #{tpu_custom_call.1} parent=0
    #allocation2 [shape = 'u8[8192]{0}', space=vmem, size = 0x2000, scoped, tag = 'input window, operand 0, single buffered']
    #allocation3 [shape = 's32[1]{0}', space=sflag, size = 0x4, scoped, tag = 'scoped memory for tpu_custom_call.1']
    #allocation4 [shape = 's32[1]{0}', space=sflag, size = 0x4, scoped, tag = 'scoped memory for tpu_custom_call.1']
    #allocation5 [shape = 'u8[16384]{0}', space=vmem, size = 0x4000, scoped, tag = 'input window, operand 1, single buffered']
    #allocation6 [shape = 's32[1]{0}', space=sflag, size = 0x4, scoped, tag = 'scoped memory for tpu_custom_call.1']
    #allocation7 [shape = 'u8[16384]{0}', space=vmem, size = 0x4000, scoped, tag = 'input window, operand 4, single buffered']
    #allocation8 [shape = 'u8[1024]{0}', space=vmem, size = 0x400, scoped, tag = 'output window, operand 0, single buffered']
    %10 = vsyncpa [#allocation3], 0
    %11 = vsyncpa [#allocation6], 0
    %12 = vsyncpa [#allocation4], 0
    // Predicated region
    $region2: #{tpu_custom_call.1} parent=1 // pred_check
      _
    $region3: #{tpu_custom_call.1} parent=1 // pred_check_branch
      %14 = sbr.rel (0) target = $region5
    $region4: #{tpu_custom_call.1} parent=1 // pred_region
      %s16 = ssub.s32 256, 256
      %17 = vsyncadd [#allocation3], %s16
      %s18 = sshll.u32 [#allocation2], 4
      %s19 = int_to_ptr.vmem [resolvable:$true] %s18
      %24 = dma.hbm_to_vmem [thread:$0]  %s0, 256, %s19, [#allocation3], 128, 128, 8
    $region5: #{tpu_custom_call.1} parent=1 // pred_fallthru
      _
    // Predicated region
    $region6: #{tpu_custom_call.1} parent=1 // pred_check
      _
    $region7: #{tpu_custom_call.1} parent=1 // pred_check_branch
      %26 = sbr.rel (0) target = $region9
    $region8: #{tpu_custom_call.1} parent=1 // pred_region
      %s28 = ssub.s32 512, 512
      %29 = vsyncadd [#allocation6], %s28
      %s30 = sshll.u32 [#allocation5], 4
      %s31 = int_to_ptr.vmem [resolvable:$true] %s30
      %36 = dma.hbm_to_vmem [thread:$0]  %s1, 512, %s31, [#allocation6], 128, 128, 8
    $region9: #{tpu_custom_call.1} parent=1 // pred_fallthru
      _
    // Predicated region
    $region10: #{tpu_custom_call.1} parent=1 // pred_check
      _
    $region11: #{tpu_custom_call.1} parent=1 // pred_check_branch
      %38 = sbr.rel (0) target = $region13
    $region12: #{tpu_custom_call.1} parent=1 // pred_region
      _
    $region13: #{tpu_custom_call.1} parent=1 // pred_fallthru
      _
    // Predicated region
    $region14: #{tpu_custom_call.1} parent=1 // pred_check
      _
    $region15: #{tpu_custom_call.1} parent=1 // pred_check_branch
      %40 = sbr.rel (0) target = $region17
    $region16: #{tpu_custom_call.1} parent=1 // pred_region
      _
    $region17: #{tpu_custom_call.1} parent=1 // pred_fallthru
      _
    // Predicated region
    $region18: #{tpu_custom_call.1} parent=1 // pred_check
      _
    $region19: #{tpu_custom_call.1} parent=1 // pred_check_branch
      %42 = sbr.rel (0) target = $region21
    $region20: #{tpu_custom_call.1} parent=1 // pred_region
      %s44 = ssub.s32 512, 512
      %45 = vsyncadd [#allocation6], %s44
      %s46 = sshll.u32 [#allocation7], 4
      %s47 = int_to_ptr.vmem [resolvable:$true] %s46
      %52 = dma.hbm_to_vmem [thread:$0]  %s4, 512, %s47, [#allocation6], 128, 128, 8
    $region21: #{tpu_custom_call.1} parent=1 // pred_fallthru
      _
    // Predicated region
    $region22: #{tpu_custom_call.1} parent=1 // pred_check
      _
    $region23: #{tpu_custom_call.1} parent=1 // pred_check_branch
      %54 = sbr.rel (0) target = $region25
    $region24: #{tpu_custom_call.1} parent=1 // pred_region
      %55 = dma.done [#allocation3], 256
    $region25: #{tpu_custom_call.1} parent=1 // pred_fallthru
      _
    // Predicated region
    $region26: #{tpu_custom_call.1} parent=1 // pred_check
      _
    $region27: #{tpu_custom_call.1} parent=1 // pred_check_branch
      %57 = sbr.rel (0) target = $region29
    $region28: #{tpu_custom_call.1} parent=1 // pred_region
      %58 = dma.done [#allocation6], 512
    $region29: #{tpu_custom_call.1} parent=1 // pred_fallthru
      _
    // Predicated region
    $region30: #{tpu_custom_call.1} parent=1 // pred_check
      _
    $region31: #{tpu_custom_call.1} parent=1 // pred_check_branch
      %60 = sbr.rel (0) target = $region33
    $region32: #{tpu_custom_call.1} parent=1 // pred_region
      %61 = dma.done [#allocation6], 512
    $region33: #{tpu_custom_call.1} parent=1 // pred_fallthru
      _
    %v62 = vld [vmem:[#allocation2] sm:$0xff]
    %v63 = vld [vmem:[#allocation2 + $0x8] sm:$0xff]
    %vm64 = vcmask 261120
    %v65 = vsel %vm64, %v62, 0.0
    %v66 = vrot.slane %v65, 4
    %v67 = vadd.f32 %v65, %v66
    %v68 = vrot.slane %v67, 2
    %v69 = vadd.f32 %v67, %v68
    %v70 = vrot.slane %v69, 1
    %v71 = vadd.f32 %v69, %v70
    %v72 = vsel %vm64, %v63, 0.0
    %v73 = vrot.slane %v72, 4
    %v74 = vadd.f32 %v72, %v73
    %v75 = vrot.slane %v74, 2
    %v76 = vadd.f32 %v74, %v75
    %v77 = vrot.slane %v76, 1
    %v78 = vadd.f32 %v76, %v77
    %v79 = vrcp.pop 8.0
    %v80 = vmul.f32 %v71, %v79
    %v81 = vmul.f32 %v78, %v79
    %v82 = vld [vmem:[#allocation7] sm:$0xff]
    %v83 = vld [vmem:[#allocation7 + $0x8] sm:$0xff]
    %v84 = vld [vmem:[#allocation7 + $0x10] sm:$0xff]
    %v85 = vld [vmem:[#allocation7 + $0x18] sm:$0xff]
    %vm88 = vcmask 1041409
    %v89 = vsel %vm88, %v81, %v80
    %v90 = vsel %vm64, %v89, 0
    %92 = vmatprep.subr.mxu0 0.0
    %93 = vmatpush1.msra.mxu0 %v82
    %94 = vmatprep.subr.mxu0 0.0
    %95 = vmatpush1.msra.mxu0 %v83
    %96 = vmatprep.subr.mxu0 0.0
    %97 = vmatpush1.msra.mxu0 %v84
    %98 = vmatprep.subr.mxu0 0.0
    %99 = vmatpush1.msra.mxu0 %v85
    %100 = vmatprep.subr.mxu0 0.0
    %101 = vmatpush1.msra.mxu0 0.0
    %102 = vmatprep.subr.mxu0 0.0
    %103 = vmatpush1.msra.mxu0 0.0
    %104 = vmatprep.subr.mxu0 0.0
    %105 = vmatpush1.msra.mxu0 0.0
    %106 = vmatprep.subr.mxu0 0.0
    %107 = vmatpush1.msra.mxu0 0.0
    %108 = vmatprep.subr.mxu0 0.0
    %109 = vmatpush1.msra.mxu0 0.0
    %110 = vmatprep.subr.mxu0 0.0
    %111 = vmatpush1.msra.mxu0 0.0
    %112 = vmatprep.subr.mxu0 0.0
    %113 = vmatpush1.msra.mxu0 0.0
    %114 = vmatprep.subr.mxu0 0.0
    %115 = vmatpush1.msra.mxu0 0.0
    %116 = vmatprep.subr.mxu0 0.0
    %117 = vmatpush1.msra.mxu0 0.0
    %118 = vmatprep.subr.mxu0 0.0
    %119 = vmatpush1.msra.mxu0 0.0
    %120 = vmatprep.subr.mxu0 0.0
    %121 = vmatpush1.msra.mxu0 0.0
    %122 = vmatprep.subr.mxu0 0.0
    %123 = vmatpush1.msra.mxu0 0.0
    %124 = vmatprep.subr.mxu0 0.0
    %125 = vmatpush1.msra.mxu0 0.0
    %126 = vmatprep.subr.mxu0 0.0
    %127 = vmatpush1.msra.mxu0 0.0
    %128 = vmatprep.subr.mxu0 0.0
    %129 = vmatpush1.msra.mxu0 0.0
    %130 = vmatprep.subr.mxu0 0.0
    %131 = vmatpush1.msra.mxu0 0.0
    %132 = vmatprep.subr.mxu0 0.0
    %133 = vmatpush1.msra.mxu0 0.0
    %134 = vmatprep.subr.mxu0 0.0
    %135 = vmatpush1.msra.mxu0 0.0
    %136 = vmatprep.subr.mxu0 0.0
    %137 = vmatpush1.msra.mxu0 0.0
    %138 = vmatprep.subr.mxu0 0.0
    %139 = vmatpush1.msra.mxu0 0.0
    %140 = vmatprep.subr.mxu0 0.0
    %141 = vmatpush1.msra.mxu0 0.0
    %142 = vmatprep.subr.mxu0 0.0
    %143 = vmatpush1.msra.mxu0 0.0
    %144 = vmatprep.subr.mxu0 0.0
    %145 = vmatpush1.msra.mxu0 0.0
    %146 = vmatprep.subr.mxu0 0.0
    %147 = vmatpush1.msra.mxu0 0.0
    %148 = vmatprep.subr.mxu0 0.0
    %149 = vmatpush1.msra.mxu0 0.0
    %150 = vmatprep.subr.mxu0 0.0
    %151 = vmatpush1.msra.mxu0 0.0
    %152 = vmatprep.subr.mxu0 0.0
    %153 = vmatpush1.msra.mxu0 0.0
    %154 = vmatprep.subr.mxu0 0.0
    %155 = vmatpush1.msra.mxu0 0.0
    %156 = vmatprep.mubr.f32.mxu0 0.0
    %157 = vmatmul.mubr.f32.gmra.mrb[0].mxu0 %v90
    %v158 = vpop.f32.mrb[0].mxu0
    %v159 = vadd.f32 0.0, %v158
    %v160 = vpop.f32.mrb[0].mxu0
    %161 = vdwg.mxu0
    %v162 = vld [vmem:[#allocation5] sm:$0xff]
    %v163 = vld [vmem:[#allocation5 + $0x8] sm:$0xff]
    %v164 = vld [vmem:[#allocation5 + $0x10] sm:$0xff]
    %v165 = vld [vmem:[#allocation5 + $0x18] sm:$0xff]
    %v167 = vsel %vm64, %v159, 0
    %169 = vmatprep.subr.mxu0 0.0
    %170 = vmatpush1.msra.mxu0 %v162
    %171 = vmatprep.subr.mxu0 0.0
    %172 = vmatpush1.msra.mxu0 %v163
    %173 = vmatprep.subr.mxu0 0.0
    %174 = vmatpush1.msra.mxu0 %v164
    %175 = vmatprep.subr.mxu0 0.0
    %176 = vmatpush1.msra.mxu0 %v165
    %177 = vmatprep.subr.mxu0 0.0
    %178 = vmatpush1.msra.mxu0 0.0
    %179 = vmatprep.subr.mxu0 0.0
    %180 = vmatpush1.msra.mxu0 0.0
    %181 = vmatprep.subr.mxu0 0.0
    %182 = vmatpush1.msra.mxu0 0.0
    %183 = vmatprep.subr.mxu0 0.0
    %184 = vmatpush1.msra.mxu0 0.0
    %185 = vmatprep.subr.mxu0 0.0
    %186 = vmatpush1.msra.mxu0 0.0
    %187 = vmatprep.subr.mxu0 0.0
    %188 = vmatpush1.msra.mxu0 0.0
    %189 = vmatprep.subr.mxu0 0.0
    %190 = vmatpush1.msra.mxu0 0.0
    %191 = vmatprep.subr.mxu0 0.0
    %192 = vmatpush1.msra.mxu0 0.0
    %193 = vmatprep.subr.mxu0 0.0
    %194 = vmatpush1.msra.mxu0 0.0
    %195 = vmatprep.subr.mxu0 0.0
    %196 = vmatpush1.msra.mxu0 0.0
    %197 = vmatprep.subr.mxu0 0.0
    %198 = vmatpush1.msra.mxu0 0.0
    %199 = vmatprep.subr.mxu0 0.0
    %200 = vmatpush1.msra.mxu0 0.0
    %201 = vmatprep.subr.mxu0 0.0
    %202 = vmatpush1.msra.mxu0 0.0
    %203 = vmatprep.subr.mxu0 0.0
    %204 = vmatpush1.msra.mxu0 0.0
    %205 = vmatprep.subr.mxu0 0.0
    %206 = vmatpush1.msra.mxu0 0.0
    %207 = vmatprep.subr.mxu0 0.0
    %208 = vmatpush1.msra.mxu0 0.0
    %209 = vmatprep.subr.mxu0 0.0
    %210 = vmatpush1.msra.mxu0 0.0
    %211 = vmatprep.subr.mxu0 0.0
    %212 = vmatpush1.msra.mxu0 0.0
    %213 = vmatprep.subr.mxu0 0.0
    %214 = vmatpush1.msra.mxu0 0.0
    %215 = vmatprep.subr.mxu0 0.0
    %216 = vmatpush1.msra.mxu0 0.0
    %217 = vmatprep.subr.mxu0 0.0
    %218 = vmatpush1.msra.mxu0 0.0
    %219 = vmatprep.subr.mxu0 0.0
    %220 = vmatpush1.msra.mxu0 0.0
    %221 = vmatprep.subr.mxu0 0.0
    %222 = vmatpush1.msra.mxu0 0.0
    %223 = vmatprep.subr.mxu0 0.0
    %224 = vmatpush1.msra.mxu0 0.0
    %225 = vmatprep.subr.mxu0 0.0
    %226 = vmatpush1.msra.mxu0 0.0
    %227 = vmatprep.subr.mxu0 0.0
    %228 = vmatpush1.msra.mxu0 0.0
    %229 = vmatprep.subr.mxu0 0.0
    %230 = vmatpush1.msra.mxu0 0.0
    %231 = vmatprep.subr.mxu0 0.0
    %232 = vmatpush1.msra.mxu0 0.0
    %233 = vmatprep.mubr.f32.mxu0 0.0
    %234 = vmatmul.mubr.f32.gmra.mrb[0].mxu0 %v167
    %v235 = vpop.f32.mrb[0].mxu0
    %v236 = vadd.f32 0.0, %v235
    %v237 = vpop.f32.mrb[0].mxu0
    %238 = vdwg.mxu0
    %v239 = vlaneseq
    %v240 = vand.u32 %v239, 127
    %vm241 = vcmp.ge.s32.totalorder %v240, 40
    %v242 = vld [vmem:[%s2] sm:$0x1]
    %v243 = vld [vmem:[%s3] sm:$0x3]
    %v244 = vlaneseq
    %v245 = vshrl.u32 %v244, 7
    %v246 = vsub.s32 0, %v245
    %v247 = vrot.slane %v242, %v246
    %248 = vset.pattern.permute.xlu0 0
    %249 = vperm.xlu0 %248, %v243
    %v250 = vpop.permute.xlu0 %249
    %vm251 = vcmp.eq.s32.totalorder %v247, %v250
    %vm252 = vmor %vm241, %vm251
    %v253 = vsel %vm252, -1e+30, %v236
    %254 = vst [vmem:[#allocation8] sm:$0x3] %v253
    // Predicated region
    $region34: #{tpu_custom_call.1} parent=1 // pred_check
      _
    $region35: #{tpu_custom_call.1} parent=1 // pred_check_branch
      %256 = sbr.rel (0) target = $region37
    $region36: #{tpu_custom_call.1} parent=1 // pred_region
      %s258 = ssub.s32 32, 32
      %259 = vsyncadd [#allocation4], %s258
      %s261 = sshll.u32 [#allocation8], 4
      %s262 = int_to_ptr.vmem [resolvable:$true] %s261
      %264 = dma.vmem_to_hbm [thread:$0]  %s262, 32, %s5, [#allocation4]
    $region37: #{tpu_custom_call.1} parent=1 // pred_fallthru
      _
    // Predicated region
    $region38: #{tpu_custom_call.1} parent=1 // pred_check
      _
    $region39: #{tpu_custom_call.1} parent=1 // pred_check_branch
      %266 = sbr.rel (0) target = $region41
    $region40: #{tpu_custom_call.1} parent=1 // pred_region
      %267 = dma.done [#allocation4], 32
    $region41: #{tpu_custom_call.1} parent=1 // pred_fallthru
      _
    %268 = vsyncpa [#allocation3], 1
    %269 = vsyncpa [#allocation6], 1
    %270 = vsyncpa [#allocation4], 1

</llo_original>
